<compile_context>
chip_gen: v7x
topology: tpu7x:2x2x1
jax: 0.10.0
libtpu: 0.0.40
codegen_flags: <defaults>
</compile_context>

<pallas_src>
import numpy as np

import jax
import jax.numpy as jnp
from jax.experimental import pallas as pl
from jax.experimental.pallas import tpu as pltpu


# --------------------------- pos table (buffer) ----------------------------- #

def make_pos_table(n_position, embed_dim):
    """Faithful replication of PositionalEncoding._get_pos_table -> (P, D) f32.

    NOTE: the reference module uses exponent 2.0 * i / embed_dim for every column i
    (there is no // 2 in this variant), so we do exactly the same.
    """
    pos = np.arange(n_position, dtype=np.float64)[:, None]            # (P, 1)
    idx = np.arange(embed_dim, dtype=np.float64)[None, :]             # (1, D)
    table = pos / np.power(10000.0, 2.0 * idx / float(embed_dim))     # (P, D)
    table[:, 0::2] = np.sin(table[:, 0::2])                           # even cols
    table[:, 1::2] = np.cos(table[:, 1::2])                           # odd  cols
    return jnp.asarray(table, dtype=jnp.float32)


# ------------------------------ Pallas kernel ------------------------------- #

def _add_pos_kernel(x_ref, pos_ref, o_ref):
    # x_ref: (Bb, Rt, C), pos_ref: (Rt, C) -> VPU broadcast-add over the batch dim.
    # Explicit cast on the store supports bf16 activations with an f32 table.
    o_ref[...] = (x_ref[...] + pos_ref[...]).astype(o_ref.dtype)


# ------------------------------ tile selection ------------------------------ #

_TARGET_BLOCK_BYTES = 2 * 1024 * 1024   # ~1-4 MiB/stream ~ 85%+ of HBM roofline
_VMEM_LIMIT_BYTES = 32 * 1024 * 1024    # >= 6 x block comfortably; fits all gens


def _row_tile(R, C, bpe, target_bytes):
    """Pick a row tile Rt for a per-batch (R, C) slab; returns (Rt, grid_r).

    Rt is either a multiple-of-8 divisor of R (exact tiling), R itself (whole slab,
    legal as the full second-minor dim), or a multiple of 8 with a masked tail block
    (grid_r = cdiv(R, Rt)).  Sized so Rt*C*bpe ~= target_bytes.
    """
    if R < 8:
        return R, 1
    max_rows = max(8, target_bytes // (C * bpe))
    best_div = 0
    for rt in range(int(min(R, max_rows)) // 8 * 8, 0, -8):
        if R % rt == 0:
            best_div = rt
            break
    if best_div >= max(8, max_rows // 4):
        return best_div, R // best_div                 # big exact-dividing tile
    if R * C * bpe <= target_bytes:
        return R, 1                                    # whole slab in one block
    if best_div:
        return best_div, R // best_div
    rt = int(max_rows) // 8 * 8                        # dense tile, masked tail
    return rt, pl.cdiv(R, rt)


# ------------------------------ forward wrapper ----------------------------- #

def positional_encoding(x, pos_table, *,
                        target_block_bytes=_TARGET_BLOCK_BYTES,
                        donate_x=False):
    """x: (B, T, D), pos_table: (P, D) f32 with P >= T -> x + pos_table[:T]."""
    B, T, D = x.shape
    P, Dp = pos_table.shape
    assert Dp == D and P >= T, "pos_table must be (n_position >= T, embed_dim)"

    bpe = x.dtype.itemsize
    L = T * D

    # Lane-dense 2-D view (R, C) of each batch row (reshapes are free / metadata-only).
    if D % 128 == 0:
        C, R = D, T
        x3 = x
        pos2 = pos_table                      # rows 0..T-1 selected by the BlockSpec
    elif L % 128 == 0:
        C = 128                               # flatten (T, D) -> (R, 128): dense lanes
        R = L // C
        x3 = x.reshape(B, R, C)
        pos2 = pos_table.reshape(-1)[:L].reshape(R, C)   # tiny buffer; one-time cost
    else:
        # TODO(synk): lane-padded fallback (neither D nor T*D divisible by 128);
        # correct but stores only use D of 128 lanes.
        C, R = D, T
        x3 = x
        pos2 = pos_table

    Rt, grid_r = _row_tile(R, C, bpe, target_block_bytes)

    # If one row tile already covers the whole per-batch slab and is still far below
    # the byte budget, fatten the block over the batch dimension instead.
    Bb = 1
    if grid_r == 1 and Rt == R:
        spare = max(1, target_block_bytes // max(1, R * C * bpe))
        for d in range(int(min(B, spare)), 0, -1):
            if B % d == 0:
                Bb = d
                break
    grid_b = B // Bb

    # Row tiles outer, batch inner: the pos tile's block index is constant across the
    # inner batch loop, so it is DMA'd once per row tile and reused from VMEM.
    grid = (grid_r, grid_b)

    out3 = pl.pallas_call(
        _add_pos_kernel,
        out_shape=jax.ShapeDtypeStruct(x3.shape, x.dtype),
        grid=grid,
        in_specs=[
            pl.BlockSpec((Bb, Rt, C), lambda r, b: (b, r, 0)),   # activations
            pl.BlockSpec((Rt, C), lambda r, b: (r, 0)),          # positional table
        ],
        out_specs=pl.BlockSpec((Bb, Rt, C), lambda r, b: (b, r, 0)),
        input_output_aliases=({0: 0} if donate_x else {}),
        compiler_params=pltpu.CompilerParams(
            dimension_semantics=("parallel", "parallel"),
            vmem_limit_bytes=_VMEM_LIMIT_BYTES),
    )(x3, pos2)

    return out3.reshape(B, T, D)


# ----------------------------------- Main ------------------------------------ #

if __name__ == "__main__":
    B, T, D = 2, 8, 32
    n_position = 200

    key = jax.random.PRNGKey(0)
    x = jax.random.normal(key, (B, T, D), jnp.float32)

    pos_table = make_pos_table(n_position, D)

    out = positional_encoding(x, pos_table)
    out = jax.block_until_ready(out)

    # reference: x + pos_table[:, :T]  (PyTorch forward)
    ref = x + pos_table[:T][None, :, :]

    assert out.shape == (B, T, D)
    assert bool(jnp.allclose(out, ref, atol=1e-6, rtol=1e-6))
    print("KERNEL_OK")
</pallas_src>

<mosaic_0001>
module attributes {stable_mosaic.version = 11 : i64} {
  func.func @_add_pos_kernel(%arg0: i32, %arg1: i32, %arg2: memref<2x2x128xf32, #tpu.memory_space<vmem>>, %arg3: memref<2x128xf32, #tpu.memory_space<vmem>>, %arg4: memref<2x2x128xf32, #tpu.memory_space<vmem>>) attributes {dimension_semantics = [#tpu.dimension_semantics<parallel>, #tpu.dimension_semantics<parallel>], iteration_bounds = array<i64: 1, 1>, scalar_prefetch = 0 : i64, scratch_operands = 0 : i64, tpu.core_type = #tpu.core_type<tc>, window_params = [{transform_indices = @transform_0, window_bounds = array<i64: 2, 2, 128>}, {transform_indices = @transform_1, window_bounds = array<i64: 2, 128>}, {transform_indices = @transform_2, window_bounds = array<i64: 2, 2, 128>}]} {
    %c0 = arith.constant 0 : index
    %c0_0 = arith.constant 0 : index
    %c0_1 = arith.constant 0 : index
    %0 = vector.load %arg2[%c0, %c0_0, %c0_1] : memref<2x2x128xf32, #tpu.memory_space<vmem>>, vector<2x2x128xf32>
    %c0_2 = arith.constant 0 : index
    %c0_3 = arith.constant 0 : index
    %1 = vector.load %arg3[%c0_2, %c0_3] : memref<2x128xf32, #tpu.memory_space<vmem>>, vector<2x128xf32>
    %2 = vector.shape_cast %1 : vector<2x128xf32> to vector<1x2x128xf32>
    %3 = vector.broadcast %2 : vector<1x2x128xf32> to vector<2x2x128xf32>
    %4 = arith.addf %0, %3 : vector<2x2x128xf32>
    %c0_4 = arith.constant 0 : index
    %c0_5 = arith.constant 0 : index
    %c0_6 = arith.constant 0 : index
    %5 = vector.load %arg4[%c0_4, %c0_5, %c0_6] : memref<2x2x128xf32, #tpu.memory_space<vmem>>, vector<2x2x128xf32>
    tpu.vector_store %arg4[%c0_4, %c0_5, %c0_6], %4 {strides = array<i32>} : memref<2x2x128xf32, #tpu.memory_space<vmem>>, vector<2x2x128xf32>,
    return
  }
  func.func @transform_0(%arg0: i32, %arg1: i32) -> (i32, i32, i32) {
    %c0_i32 = arith.constant 0 : i32
    %c0_i32_0 = arith.constant 0 : i32
    return %arg1, %arg0, %c0_i32 : i32, i32, i32
  }
  func.func @transform_1(%arg0: i32, %arg1: i32) -> (i32, i32) {
    %c0_i32 = arith.constant 0 : i32
    %c0_i32_0 = arith.constant 0 : i32
    return %arg0, %c0_i32 : i32, i32
  }
  func.func @transform_2(%arg0: i32, %arg1: i32) -> (i32, i32, i32) {
    %c0_i32 = arith.constant 0 : i32
    %c0_i32_0 = arith.constant 0 : i32
    return %arg1, %arg0, %c0_i32 : i32, i32, i32
  }
}

</mosaic_0001>

<llo_original>
// kernel: tpu_custom_call.1
$region0: #{tpu_custom_call.1}
  #allocation0 [shape = 'u32[]', space=smem, size = 0x4, offset = 0x4, fixed_abs, tag = 'smem constant byte address 0x4 - core index']
  #allocation1 [shape = 'u32[144,128]{1,0:T(1,128)}', space=vmem, size = 0x12000, scoped, tag = 'internal scratch']
  %s0 = inlined_call_operand.hbm [shape: f32[2,2,128], index: 0, kind: input, shape index: {}]
  %s1 = inlined_call_operand.vmem [shape: f32[2,128], index: 1, kind: input, shape index: {}]
  %s2 = inlined_call_operand.hbm [shape: f32[2,2,128], index: 2, kind: output, shape index: {}]
  %s3 = sld [smem:[#allocation0]]
  $region22: #{tpu_custom_call.1} parent=0
    _
  %s5 = ssub.s32 1, %s3
  %s6 = scalar_select 0, %s5, %s3
  $region1: #{tpu_custom_call.1} parent=0
    #allocation2 [shape = 'u8[2048]{0}', space=vmem, size = 0x800, scoped, tag = 'input window, operand 0, single buffered']
    #allocation3 [shape = 's32[1]{0}', space=sflag, size = 0x4, scoped, tag = 'scoped memory for tpu_custom_call.1']
    #allocation4 [shape = 's32[1]{0}', space=sflag, size = 0x4, scoped, tag = 'scoped memory for tpu_custom_call.1']
    #allocation5 [shape = 'u8[2048]{0}', space=vmem, size = 0x800, scoped, tag = 'output window, operand 0, single buffered']
    %7 = vsyncpa [#allocation3], 0
    %8 = vsyncpa [#allocation4], 0
    // Predicated region
    $region2: #{tpu_custom_call.1} parent=1 // pred_check
      _
    $region3: #{tpu_custom_call.1} parent=1 // pred_check_branch
      %10 = sbr.rel (0) target = $region5
    $region4: #{tpu_custom_call.1} parent=1 // pred_region
      %s12 = ssub.s32 64, 64
      %13 = vsyncadd [#allocation3], %s12
      %s14 = sshll.u32 [#allocation2], 4
      %s15 = int_to_ptr.vmem [resolvable:$true] %s14
      %20 = dma.hbm_to_vmem [thread:$0]  %s0, 64, %s15, [#allocation3], 32, 32, 2
    $region5: #{tpu_custom_call.1} parent=1 // pred_fallthru
      _
    // Predicated region
    $region6: #{tpu_custom_call.1} parent=1 // pred_check
      _
    $region7: #{tpu_custom_call.1} parent=1 // pred_check_branch
      %22 = sbr.rel (0) target = $region9
    $region8: #{tpu_custom_call.1} parent=1 // pred_region
      _
    $region9: #{tpu_custom_call.1} parent=1 // pred_fallthru
      _
    // Predicated region
    $region10: #{tpu_custom_call.1} parent=1 // pred_check
      _
    $region11: #{tpu_custom_call.1} parent=1 // pred_check_branch
      %24 = sbr.rel (0) target = $region13
    $region12: #{tpu_custom_call.1} parent=1 // pred_region
      %25 = dma.done [#allocation3], 64
    $region13: #{tpu_custom_call.1} parent=1 // pred_fallthru
      _
    %v26 = vld [vmem:[#allocation2] sm:$0x3]
    %v27 = vld [vmem:[#allocation2 + $0x2] sm:$0x3]
    %v28 = vld [vmem:[%s1] sm:$0x3]
    %v29 = vadd.f32 %v26, %v28
    %v30 = vadd.f32 %v27, %v28
    %31 = vst [vmem:[#allocation5] sm:$0x3] %v29
    %32 = vst [vmem:[#allocation5 + $0x2] sm:$0x3] %v30
    // Predicated region
    $region14: #{tpu_custom_call.1} parent=1 // pred_check
      _
    $region15: #{tpu_custom_call.1} parent=1 // pred_check_branch
      %34 = sbr.rel (0) target = $region17
    $region16: #{tpu_custom_call.1} parent=1 // pred_region
      %s36 = ssub.s32 64, 64
      %37 = vsyncadd [#allocation4], %s36
      %s38 = sshll.u32 [#allocation5], 4
      %s39 = int_to_ptr.vmem [resolvable:$true] %s38
      %44 = dma.vmem_to_hbm [thread:$0]  %s39, 64, %s2, [#allocation4], 32, 32, 2
    $region17: #{tpu_custom_call.1} parent=1 // pred_fallthru
      _
    // Predicated region
    $region18: #{tpu_custom_call.1} parent=1 // pred_check
      _
    $region19: #{tpu_custom_call.1} parent=1 // pred_check_branch
      %46 = sbr.rel (0) target = $region21
    $region20: #{tpu_custom_call.1} parent=1 // pred_region
      %47 = dma.done [#allocation4], 64
    $region21: #{tpu_custom_call.1} parent=1 // pred_fallthru
      _
    %48 = vsyncpa [#allocation3], 1
    %49 = vsyncpa [#allocation4], 1

</llo_original>
